<compile_context>
chip_gen: v7x
topology: tpu7x:2x2x1
jax: 0.10.0
libtpu: 0.0.40
codegen_flags: <defaults>
</compile_context>

<pallas_src>
import functools
import math

import jax
import jax.numpy as jnp
from jax.experimental import pallas as pl
from jax.experimental.pallas import tpu as pltpu

_LANE = 128
_LANE_CAP = 2048            # widest lane tile we ever ask for


def _cdiv(a, b):
    return -(-a // b)


def _round_up(a, b):
    return _cdiv(a, b) * b


def _sublane_min(dtype):
    # sublane packing granule per dtype: f32 -> 8, bf16/f16 -> 16, int8/fp8 -> 32
    return {4: 8, 2: 16, 1: 32}.get(jnp.dtype(dtype).itemsize, 8)


def _vmem_budget():
    """(per-block byte budget, vmem_limit_bytes), sized per TPU generation."""
    try:
        cap = pltpu.get_tpu_info().vmem_capacity_bytes
    except Exception:
        cap = 64 * 1024 * 1024                      # conservative: assume v7x
    if cap >= 96 * 1024 * 1024:                     # v5e / v6e: 128 MiB VMEM
        return 4 * 1024 * 1024, 64 * 1024 * 1024
    return 2 * 1024 * 1024, 32 * 1024 * 1024        # v7x: 64 MiB VMEM


def _compute_dtype(x_dtype):
    """bf16 math on bf16-native VPUs (v6e/v7x); f32 everywhere else."""
    if jnp.dtype(x_dtype) != jnp.bfloat16:
        return jnp.float32
    try:
        kind = jax.devices()[0].device_kind.lower()
    except Exception:
        kind = ""
    if any(t in kind for t in ("v2", "v3", "v4", "v5")):
        return jnp.float32          # no bf16 VPU/EUP on these parts
    return jnp.bfloat16


def _compiler_params(sem, vmem_limit):
    return pltpu.CompilerParams(dimension_semantics=sem,
                                vmem_limit_bytes=vmem_limit)


def _glu_kernel(a_ref, g_ref, o_ref, *, compute_dtype):
    # Pure VPU/EUP elementwise work on identically-shaped blocks.
    a = a_ref[...].astype(compute_dtype)
    g = g_ref[...].astype(compute_dtype)
    o_ref[...] = (a * jax.nn.sigmoid(g)).astype(o_ref.dtype)


def _pick_half_lane_tile(c, cap=_LANE_CAP):
    """Largest multiple-of-128 exact divisor of c (<= cap); None if 128 !| c."""
    if c % _LANE != 0:
        return None
    best = _LANE
    t = _LANE
    limit = min(c, cap)
    while t <= limit:
        if c % t == 0:
            best = t
        t += _LANE
    return best


def _pick_row_tile(m, lane_elems, itemsize, s, budget, other_grid_blocks):
    """Sublane (row) tile: VMEM-budget sized, then capped so the leading
    'parallel' axis has >= 2 blocks when nothing else can feed v7x's 2 TCs."""
    row_bytes = _round_up(lane_elems, _LANE) * itemsize
    tm = max((budget // row_bytes) // s * s, s)
    if tm >= m:
        tm = m                                  # full extent: always layout-legal
    if other_grid_blocks < 2 and tm >= m and m >= 2 * s:
        tm = _round_up(_cdiv(m, 2), s)          # multiple of s -> layout-legal
    return tm


def glu_pallas(x, dim):
    """Pallas GLU matching torch: out, gate = x.chunk(2, dim); out * sigmoid(gate)."""
    ndim = x.ndim
    dim = dim % ndim
    two_c = x.shape[dim]
    assert two_c % 2 == 0, "GLU split axis must be even"
    c = two_c // 2

    itemsize = jnp.dtype(x.dtype).itemsize
    s = _sublane_min(x.dtype)
    block_bytes, vmem_limit = _vmem_budget()
    kernel = functools.partial(_glu_kernel, compute_dtype=_compute_dtype(x.dtype))

    lead = x.shape[:dim]
    trail = x.shape[dim + 1:]
    b = math.prod(lead) if lead else 1
    n = math.prod(trail) if trail else 1
    out_shape_final = lead + (c,) + trail

    n_out = b * c * n
    cost = pl.CostEstimate(flops=2 * n_out, transcendentals=n_out,
                           bytes_accessed=3 * n_out * itemsize)

    # ---------- Fast path: minor-most split with 128-aligned halves ----------
    if n == 1 and c % _LANE == 0:
        m = b
        x2d = x.reshape(m, two_c)
        tc = _pick_half_lane_tile(c)            # exists because c % 128 == 0
        gate_off = c // tc
        lane_blocks = c // tc
        tm = _pick_row_tile(m, tc, itemsize, s, block_bytes, lane_blocks)
        grid = (_cdiv(m, tm), lane_blocks)
        out2d = pl.pallas_call(
            kernel,
            out_shape=jax.ShapeDtypeStruct((m, c), x.dtype),
            grid_spec=pltpu.PrefetchScalarGridSpec(
                num_scalar_prefetch=0,
                grid=grid,
                in_specs=[
                    pl.BlockSpec((tm, tc), lambda i, j: (i, j)),          # out half
                    pl.BlockSpec((tm, tc),
                                 lambda i, j, _o=gate_off: (i, j + _o)),  # gate half
                ],
                out_specs=pl.BlockSpec((tm, tc), lambda i, j: (i, j)),
            ),
            compiler_params=_compiler_params(("parallel", "parallel"), vmem_limit),
            cost_estimate=cost,
        )(x2d, x2d)
        return out2d.reshape(out_shape_final)

    # ---------- General path: halves selected on a size-2 axis ----------
    # Free reshape to (B, 2, C', N').  A minor-most split with non-128-multiple
    # halves lands here as (M, 2, 1, C): blocks stay lane-dense (the odd HBM
    # lane offset of the gate half is absorbed by the DMA, not by the VPU/XLU).
    if n == 1:
        c4, n4 = 1, c
    else:
        c4, n4 = c, n

    # Lane densification: fold the contiguous per-half (C', N') region into
    # rows of the widest 128-multiple width dividing C'*N'.
    if n4 % _LANE != 0 and c4 * n4 >= _LANE:
        best = None
        t = _LANE
        limit = min(c4 * n4, _LANE_CAP)
        while t <= limit:
            if (c4 * n4) % t == 0:
                best = t
            t += _LANE
        if best is not None:
            c4, n4 = (c4 * n4) // best, best

    x4 = x.reshape(b, 2, c4, n4)

    # Lane tile.
    if n4 < _LANE:
        tn = n4                                          # full extent (legal)
    else:
        tn = min((n4 // _LANE) * _LANE, _LANE_CAP)       # multiple of 128

    # Channel (sublane) tile, sized from the *physical* VMEM block footprint.
    lane_phys = _round_up(tn, _LANE) * itemsize
    if _round_up(c4, s) * lane_phys <= block_bytes:
        tc4 = c4                                         # full extent (legal)
    else:
        tc4 = max(s, (block_bytes // lane_phys) // s * s)

    # Batch tile: amortize per-grid-step overhead when C'*N' is small.
    blk_phys = _round_up(tc4, s) * lane_phys
    tb = max(1, min(b, block_bytes // max(1, blk_phys)))

    # v7x megacore: keep the leading parallel axis splittable across 2 TCs.
    other_blocks = _cdiv(c4, tc4) * _cdiv(n4, tn)
    if other_blocks < 2 and tb >= b and b >= 2:
        tb = _cdiv(b, 2)

    grid = (_cdiv(b, tb), _cdiv(c4, tc4), _cdiv(n4, tn))
    blk = (tb, 1, tc4, tn)

    out4 = pl.pallas_call(
        kernel,
        out_shape=jax.ShapeDtypeStruct((b, 1, c4, n4), x.dtype),
        grid_spec=pltpu.PrefetchScalarGridSpec(
            num_scalar_prefetch=0,
            grid=grid,
            in_specs=[
                pl.BlockSpec(blk, lambda bi, ci, ni: (bi, 0, ci, ni)),   # out half
                pl.BlockSpec(blk, lambda bi, ci, ni: (bi, 1, ci, ni)),   # gate half
            ],
            out_specs=pl.BlockSpec(blk, lambda bi, ci, ni: (bi, 0, ci, ni)),
        ),
        compiler_params=_compiler_params(("parallel",) * 3, vmem_limit),
        cost_estimate=cost,
    )(x4, x4)
    return out4.reshape(out_shape_final)


def glu_reference(x, dim):
    out, gate = jnp.split(x, 2, axis=dim)
    return out * jax.nn.sigmoid(gate)


if __name__ == "__main__":
    key = jax.random.PRNGKey(0)
    k1, k2, k3, k4 = jax.random.split(key, 4)

    # Case 1: NCHW-style tensor, split on channel dim=1 (no transposes).
    x_nchw = jax.random.normal(k1, (2, 4, 16, 16), dtype=jnp.float32)
    y1 = jax.block_until_ready(glu_pallas(x_nchw, 1))
    assert y1.shape == (2, 2, 16, 16)
    assert jnp.allclose(y1, glu_reference(x_nchw, 1), atol=1e-6, rtol=1e-6)

    # Case 2: last-dim split with lane-aligned halves (C = 128) -> 2D fast path.
    x_seq = jax.random.normal(k2, (2, 8, 256), dtype=jnp.float32)
    y2 = jax.block_until_ready(glu_pallas(x_seq, -1))
    assert y2.shape == (2, 8, 128)
    assert jnp.allclose(y2, glu_reference(x_seq, -1), atol=1e-6, rtol=1e-6)

    # Case 3: last-dim split, non-128-multiple halves (C = 96) -> indexed-halves
    # general path (the in-kernel-slice fallback kernel is gone).
    x_odd = jax.random.normal(k3, (2, 8, 192), dtype=jnp.float32)
    y3 = jax.block_until_ready(glu_pallas(x_odd, -1))
    assert y3.shape == (2, 8, 96)
    assert jnp.allclose(y3, glu_reference(x_odd, -1), atol=1e-6, rtol=1e-6)

    # Case 4: bf16 inputs (bf16 math on v6e/v7x, f32 math on older parts).
    x_bf16 = jax.random.normal(k4, (4, 8, 256), dtype=jnp.bfloat16)
    y4 = jax.block_until_ready(glu_pallas(x_bf16, -1))
    assert y4.shape == (4, 8, 128)
    assert jnp.allclose(y4.astype(jnp.float32),
                        glu_reference(x_bf16, -1).astype(jnp.float32),
                        atol=1e-1, rtol=1e-1)

    print("KERNEL_OK")
</pallas_src>

<mosaic_0001>
module attributes {stable_mosaic.version = 11 : i64} {
  func.func @_glu_kernel(%arg0: i32, %arg1: i32, %arg2: i32, %arg3: memref<1x1x2x256xf32, #tpu.memory_space<vmem>>, %arg4: memref<1x1x2x256xf32, #tpu.memory_space<vmem>>, %arg5: memref<1x1x2x256xf32, #tpu.memory_space<vmem>>) attributes {dimension_semantics = [#tpu.dimension_semantics<parallel>, #tpu.dimension_semantics<parallel>, #tpu.dimension_semantics<parallel>], iteration_bounds = array<i64: 2, 1, 1>, scalar_prefetch = 0 : i64, scratch_operands = 0 : i64, tpu.core_type = #tpu.core_type<tc>, window_params = [{transform_indices = @transform_0, window_bounds = array<i64: 1, 1, 2, 256>}, {transform_indices = @transform_1, window_bounds = array<i64: 1, 1, 2, 256>}, {transform_indices = @transform_2, window_bounds = array<i64: 1, 1, 2, 256>}]} {
    %c0 = arith.constant 0 : index
    %c0_0 = arith.constant 0 : index
    %c0_1 = arith.constant 0 : index
    %c0_2 = arith.constant 0 : index
    %0 = vector.load %arg3[%c0, %c0_0, %c0_1, %c0_2] : memref<1x1x2x256xf32, #tpu.memory_space<vmem>>, vector<1x1x2x256xf32>
    %c0_3 = arith.constant 0 : index
    %c0_4 = arith.constant 0 : index
    %c0_5 = arith.constant 0 : index
    %c0_6 = arith.constant 0 : index
    %1 = vector.load %arg4[%c0_3, %c0_4, %c0_5, %c0_6] : memref<1x1x2x256xf32, #tpu.memory_space<vmem>>, vector<1x1x2x256xf32>
    %2 = arith.negf %1 : vector<1x1x2x256xf32>
    %3 = math.exp %2 : vector<1x1x2x256xf32>
    %cst = arith.constant 1.000000e+00 : f32
    %4 = vector.broadcast %cst : f32 to vector<1x1x2x256xf32>
    %5 = arith.addf %4, %3 : vector<1x1x2x256xf32>
    %6 = arith.divf %4, %5 : vector<1x1x2x256xf32>
    %7 = arith.mulf %0, %6 : vector<1x1x2x256xf32>
    %c0_7 = arith.constant 0 : index
    %c0_8 = arith.constant 0 : index
    %c0_9 = arith.constant 0 : index
    %c0_10 = arith.constant 0 : index
    %8 = vector.load %arg5[%c0_7, %c0_8, %c0_9, %c0_10] : memref<1x1x2x256xf32, #tpu.memory_space<vmem>>, vector<1x1x2x256xf32>
    tpu.vector_store %arg5[%c0_7, %c0_8, %c0_9, %c0_10], %7 {strides = array<i32>} : memref<1x1x2x256xf32, #tpu.memory_space<vmem>>, vector<1x1x2x256xf32>,
    return
  }
  func.func @transform_0(%arg0: i32, %arg1: i32, %arg2: i32) -> (i32, i32, i32, i32) {
    %c0_i32 = arith.constant 0 : i32
    %c0_i32_0 = arith.constant 0 : i32
    return %arg0, %c0_i32, %arg1, %arg2 : i32, i32, i32, i32
  }
  func.func @transform_1(%arg0: i32, %arg1: i32, %arg2: i32) -> (i32, i32, i32, i32) {
    %c1_i32 = arith.constant 1 : i32
    %c0_i32 = arith.constant 0 : i32
    return %arg0, %c1_i32, %arg1, %arg2 : i32, i32, i32, i32
  }
  func.func @transform_2(%arg0: i32, %arg1: i32, %arg2: i32) -> (i32, i32, i32, i32) {
    %c0_i32 = arith.constant 0 : i32
    %c0_i32_0 = arith.constant 0 : i32
    return %arg0, %c0_i32, %arg1, %arg2 : i32, i32, i32, i32
  }
}

</mosaic_0001>

<llo_original>
// kernel: tpu_custom_call.1
$region0: #{tpu_custom_call.1}
  #allocation0 [shape = 'u32[]', space=smem, size = 0x4, offset = 0x4, fixed_abs, tag = 'smem constant byte address 0x4 - core index']
  #allocation1 [shape = 'u32[144,128]{1,0:T(1,128)}', space=vmem, size = 0x12000, scoped, tag = 'internal scratch']
  %s0 = inlined_call_operand.hbm [shape: f32[2,2,2,256], index: 0, kind: input, shape index: {}]
  %s1 = inlined_call_operand.hbm [shape: f32[2,2,2,256], index: 1, kind: input, shape index: {}]
  %s2 = inlined_call_operand.hbm [shape: f32[2,1,2,256], index: 2, kind: output, shape index: {}]
  %s3 = sld [smem:[#allocation0]]
  $region49: #{tpu_custom_call.1} parent=0
    _
  %s5 = ssub.s32 1, %s3
  %s6 = scalar_select 0, %s5, %s3
  $region1: #{tpu_custom_call.1} parent=0
    #allocation2 [shape = 'u8[4096]{0}', space=vmem, size = 0x1000, scoped, tag = 'input window, operand 0']
    #allocation3 [shape = 's32[2]{0}', space=sflag, size = 0x8, scoped, tag = 'scoped memory for tpu_custom_call.1']
    #allocation4 [shape = 's32[2]{0}', space=sflag, size = 0x8, scoped, tag = 'scoped memory for tpu_custom_call.1']
    #allocation5 [shape = 'u8[4096]{0}', space=vmem, size = 0x1000, scoped, tag = 'input window, operand 1']
    #allocation6 [shape = 's32[2]{0}', space=sflag, size = 0x8, scoped, tag = 'scoped memory for tpu_custom_call.1']
    #allocation7 [shape = 'u8[4096]{0}', space=vmem, size = 0x1000, scoped, tag = 'output window, operand 0']
    %7 = vsyncpa [#allocation3], 0
    %s8 = scalar_lea.sflag [#allocation3], 1
    %9 = vsyncpa %s8, 0
    %10 = vsyncpa [#allocation6], 0
    %s11 = scalar_lea.sflag [#allocation6], 1
    %12 = vsyncpa %s11, 0
    %13 = vsyncpa [#allocation4], 0
    %s14 = scalar_lea.sflag [#allocation4], 1
    %15 = vsyncpa %s14, 0
    loop: start=0, step=1, limit=4
    $region2: #{tpu_custom_call.1} parent=1 // loop_pre_header
      _
    $region3: #{tpu_custom_call.1} parent=1 // loop_header
      %s17 = sphi 0, %s21
      %p18 = scmp.ge.s32.totalorder %s17, 4
      %s24 = sphi 0, %s43
      %s25 = sphi 0, %s39
      %s26 = sphi 0, %s35
      %s27 = sphi 0, %s24
      %s28 = sphi 0, %s25
      %s29 = sphi 0, %s26
      %s30 = sphi 0, %s27
      %s31 = sphi 0, %s28
      %s32 = sphi 0, %s29
      %s50 = sphi 0, %s52
      %s53 = sphi 0, %s50
      %s54 = sphi 0, %s53
      %s70 = sphi 0, %s54
      %s80 = sphi 0, %s82
      %s83 = sphi 0, %s80
      %s84 = sphi 0, %s83
      %s100 = sphi 0, %s84
      %s110 = sphi 0, %s112
      %s113 = sphi 0, %s110
      %s114 = sphi 0, %s113
      %s130 = sphi 0, %s114
    $region4: #{tpu_custom_call.1} parent=1 // loop_header_branch
      %20 = sbr.rel (%p18) target = $region8
    $region5: #{tpu_custom_call.1} parent=1 // loop_body
      %s22 = ssub.s32 %s17, 1
      %s23 = ssub.s32 %s17, 2
      %s33 = sadd.s32 1, %s26
      %p34 = scmp.ge.s32.totalorder %s33, 1
      %s35 = scalar_select %p34, 0, %s33
      %s36 = sadd.s32 1, %s25
      %s37 = scalar_select %p34, %s36, %s25
      %p38 = scmp.ge.s32.totalorder %s37, 1
      %s39 = scalar_select %p38, 0, %s37
      %s40 = sadd.s32 1, %s24
      %s41 = scalar_select %p38, %s40, %s24
      %p42 = scmp.ge.s32.totalorder %s41, 2
      %s43 = scalar_select %p42, 0, %s41
      %s44 = ssub.s32 %s24, %s43
      %s45 = ssub.s32 %s25, %s39
      %s46 = sor.u32 %s44, %s45
      %s47 = ssub.s32 %s26, %s35
      %s48 = sor.u32 %s46, %s47
      %p49 = scmp.eq.s32.totalorder %s48, 0
      %s51 = sadd.s32 %s50, 1
      %s52 = scalar_select %p49, %s50, %s51
      %p55 = pneg %p49
      %p56 = scmp.eq.s32.totalorder %s17, 1
      %p57 = por %p55, %p56
      %p58 = scmp.ne.s32.totalorder %s50, %s53
      %p59 = scmp.eq.s32.totalorder %s17, 0
      %p60 = por %p58, %p59
      %p61 = scmp.ne.s32.totalorder %s50, %s53
      %p62 = scmp.eq.s32.totalorder %s22, 1
      %p63 = por %p61, %p62
      %p64 = scmp.ne.s32.totalorder %s53, %s54
      %p65 = scmp.eq.s32.totalorder %s22, 0
      %p66 = por %p64, %p65
      %p67 = scmp.ne.s32.totalorder %s53, %s54
      %p68 = scmp.eq.s32.totalorder %s23, 1
      %p69 = por %p67, %p68
      %p71 = scmp.ne.s32.totalorder %s54, %s70
      %p72 = scmp.eq.s32.totalorder %s23, 0
      %p73 = por %p71, %p72
      %s74 = ssub.s32 %s24, %s43
      %s75 = ssub.s32 %s25, %s39
      %s76 = sor.u32 %s74, %s75
      %s77 = ssub.s32 %s26, %s35
      %s78 = sor.u32 %s76, %s77
      %p79 = scmp.eq.s32.totalorder %s78, 0
      %s81 = sadd.s32 %s80, 1
      %s82 = scalar_select %p79, %s80, %s81
      %p85 = pneg %p79
      %p86 = scmp.eq.s32.totalorder %s17, 1
      %p87 = por %p85, %p86
      %p88 = scmp.ne.s32.totalorder %s80, %s83
      %p89 = scmp.eq.s32.totalorder %s17, 0
      %p90 = por %p88, %p89
      %p91 = scmp.ne.s32.totalorder %s80, %s83
      %p92 = scmp.eq.s32.totalorder %s22, 1
      %p93 = por %p91, %p92
      %p94 = scmp.ne.s32.totalorder %s83, %s84
      %p95 = scmp.eq.s32.totalorder %s22, 0
      %p96 = por %p94, %p95
      %p97 = scmp.ne.s32.totalorder %s83, %s84
      %p98 = scmp.eq.s32.totalorder %s23, 1
      %p99 = por %p97, %p98
      %p101 = scmp.ne.s32.totalorder %s84, %s100
      %p102 = scmp.eq.s32.totalorder %s23, 0
      %p103 = por %p101, %p102
      %s104 = ssub.s32 %s24, %s43
      %s105 = ssub.s32 %s25, %s39
      %s106 = sor.u32 %s104, %s105
      %s107 = ssub.s32 %s26, %s35
      %s108 = sor.u32 %s106, %s107
      %p109 = scmp.eq.s32.totalorder %s108, 0
      %s111 = sadd.s32 %s110, 1
      %s112 = scalar_select %p109, %s110, %s111
      %p115 = pneg %p109
      %p116 = scmp.eq.s32.totalorder %s17, 1
      %p117 = por %p115, %p116
      %p118 = scmp.ne.s32.totalorder %s110, %s113
      %p119 = scmp.eq.s32.totalorder %s17, 0
      %p120 = por %p118, %p119
      %p121 = scmp.ne.s32.totalorder %s110, %s113
      %p122 = scmp.eq.s32.totalorder %s22, 1
      %p123 = por %p121, %p122
      %p124 = scmp.ne.s32.totalorder %s113, %s114
      %p125 = scmp.eq.s32.totalorder %s22, 0
      %p126 = por %p124, %p125
      %p127 = scmp.ne.s32.totalorder %s113, %s114
      %p128 = scmp.eq.s32.totalorder %s23, 1
      %p129 = por %p127, %p128
      %p131 = scmp.ne.s32.totalorder %s114, %s130
      %p132 = scmp.eq.s32.totalorder %s23, 0
      %p133 = por %p131, %p132
      %p134 = scmp.le.s32.totalorder 1, %s17
      %p135 = scmp.lt.s32.totalorder %s17, 3
      %p136 = pnand %p134, %p135
      %p137 = pneg %p136
      // Predicated region
      $region9: #{tpu_custom_call.1} parent=5 // pred_check
        _
      $region10: #{tpu_custom_call.1} parent=5 // pred_check_branch
        %139 = sbr.rel (%p136) target = $region12
      $region11: #{tpu_custom_call.1} parent=5 // pred_region
        %s140 = ssub.s32 %s17, 1
      $region12: #{tpu_custom_call.1} parent=5 // pred_fallthru
        _
      %p141 = scmp.lt.s32.totalorder %s17, 2
      // Predicated region
      $region13: #{tpu_custom_call.1} parent=5 // pred_check
        %p142 = pneg %p141
      $region14: #{tpu_custom_call.1} parent=5 // pred_check_branch
        %144 = sbr.rel (%p142) target = $region16
      $region15: #{tpu_custom_call.1} parent=5 // pred_region
        // Predicated region
        $region17: #{tpu_custom_call.1} parent=15 // pred_check
          %p145 = pneg %p60
        $region18: #{tpu_custom_call.1} parent=15 // pred_check_branch
          %147 = sbr.rel (%p145) target = $region20
        $region19: #{tpu_custom_call.1} parent=15 // pred_region
          %s148 = sand.u32 %s50, 1
          %s149 = scalar_lea.sflag [#allocation3], %s148
          %s150 = sand.u32 %s50, 1
          %s151 = smul.addr %s150, 4
          %s152 = scalar_lea.vmem [#allocation2], %s151
          %s153 = smul.u32 2, %s26
          %s155 = ssub.s32 64, 64
          %156 = vsyncadd %s149, %s155
          %s157 = smul.addr %s25, 2
          %s158 = sadd.s32 %s153, %s157
          %s159 = smul.addr %s24, 4
          %s160 = sadd.s32 %s158, %s159
          %s161 = smul.addr %s160, 32
          %s162 = scalar_lea.hbm %s0, %s161
          %s164 = sshll.u32 %s152, 4
          %s165 = int_to_ptr.vmem [resolvable:$true] %s164
          %167 = dma.hbm_to_vmem [thread:$0]  %s162, 64, %s165, %s149
        $region20: #{tpu_custom_call.1} parent=15 // pred_fallthru
          _
        // Predicated region
        $region21: #{tpu_custom_call.1} parent=15 // pred_check
          %p168 = pneg %p90
        $region22: #{tpu_custom_call.1} parent=15 // pred_check_branch
          %170 = sbr.rel (%p168) target = $region24
        $region23: #{tpu_custom_call.1} parent=15 // pred_region
          %s171 = sand.u32 %s80, 1
          %s172 = scalar_lea.sflag [#allocation6], %s171
          %s173 = sand.u32 %s80, 1
          %s174 = smul.addr %s173, 4
          %s175 = scalar_lea.vmem [#allocation5], %s174
          %s176 = smul.u32 2, %s26
          %s178 = ssub.s32 64, 64
          %179 = vsyncadd %s172, %s178
          %s180 = smul.addr %s25, 2
          %s181 = sadd.s32 %s176, %s180
          %s182 = sadd.s32 %s181, 2
          %s183 = smul.addr %s24, 4
          %s184 = sadd.s32 %s182, %s183
          %s185 = smul.addr %s184, 32
          %s186 = scalar_lea.hbm %s1, %s185
          %s188 = sshll.u32 %s175, 4
          %s189 = int_to_ptr.vmem [resolvable:$true] %s188
          %191 = dma.hbm_to_vmem [thread:$0]  %s186, 64, %s189, %s172
        $region24: #{tpu_custom_call.1} parent=15 // pred_fallthru
          _
      $region16: #{tpu_custom_call.1} parent=5 // pred_fallthru
        _
      %p192 = scmp.le.s32.totalorder 1, %s17
      %p193 = scmp.lt.s32.totalorder %s17, 3
      %p194 = pnand %p192, %p193
      %p195 = pneg %p194
      // Predicated region
      $region25: #{tpu_custom_call.1} parent=5 // pred_check
        _
      $region26: #{tpu_custom_call.1} parent=5 // pred_check_branch
        %197 = sbr.rel (%p194) target = $region28
      $region27: #{tpu_custom_call.1} parent=5 // pred_region
        %s198 = ssub.s32 %s17, 1
        %s199 = sand.u32 %s53, 1
        %s200 = scalar_lea.sflag [#allocation3], %s199
        %s201 = sand.u32 %s53, 1
        %s202 = smul.addr %s201, 4
        %s203 = scalar_lea.vmem [#allocation2], %s202
        // Predicated region
        $region29: #{tpu_custom_call.1} parent=27 // pred_check
          %p204 = pneg %p66
        $region30: #{tpu_custom_call.1} parent=27 // pred_check_branch
          %206 = sbr.rel (%p204) target = $region32
        $region31: #{tpu_custom_call.1} parent=27 // pred_region
          %207 = dma.done %s200, 64
        $region32: #{tpu_custom_call.1} parent=27 // pred_fallthru
          _
        %s208 = sand.u32 %s83, 1
        %s209 = scalar_lea.sflag [#allocation6], %s208
        %s210 = sand.u32 %s83, 1
        %s211 = smul.addr %s210, 4
        %s212 = scalar_lea.vmem [#allocation5], %s211
        // Predicated region
        $region33: #{tpu_custom_call.1} parent=27 // pred_check
          %p213 = pneg %p96
        $region34: #{tpu_custom_call.1} parent=27 // pred_check_branch
          %215 = sbr.rel (%p213) target = $region36
        $region35: #{tpu_custom_call.1} parent=27 // pred_region
          %216 = dma.done %s209, 64
        $region36: #{tpu_custom_call.1} parent=27 // pred_fallthru
          _
        %s217 = sand.u32 %s53, 1
        %s218 = scalar_lea.sflag [#allocation3], %s217
        %s219 = sand.u32 %s53, 1
        %s220 = smul.addr %s219, 4
        %s221 = scalar_lea.vmem [#allocation2], %s220
        %p222 = pneg %p66
        %p223 = pneg %p63
        %s224 = sand.u32 %s83, 1
        %s225 = scalar_lea.sflag [#allocation6], %s224
        %s226 = sand.u32 %s83, 1
        %s227 = smul.addr %s226, 4
        %s228 = scalar_lea.vmem [#allocation5], %s227
        %p229 = pneg %p96
        %p230 = pneg %p93
        %p231 = pneg %p126
        %p232 = pneg %p123
        %s233 = sand.u32 %s113, 1
        %s234 = scalar_lea.sflag [#allocation4], %s233
        %s235 = sand.u32 %s113, 1
        %s236 = smul.addr %s235, 4
        %s237 = scalar_lea.vmem [#allocation7], %s236
        %s238 = smul.u32 2, %s29
        %s239 = smul.u32 2, %s29
        %s240 = smul.u32 2, %s29
        %v241 = vld [vmem:[%s203] sm:$0xf]
        %v242 = vld [vmem:[%s212] sm:$0xf]
        %v243 = vxor.u32 %v242, 2147483648
        %v244 = vmul.f32 %v243, 1.442695
        %v245 = vpow.pop %v244
        %v246 = vadd.f32 %v245, 1.0
        %v247 = vrcp.pop %v246
        %v248 = vmul.f32 1.0, %v247
        %v249 = vmul.f32 %v241, %v248
        %250 = vst [vmem:[%s237] sm:$0xf] %v249
        %s251 = sand.u32 %s113, 1
        %s252 = scalar_lea.sflag [#allocation4], %s251
        %s253 = sand.u32 %s113, 1
        %s254 = smul.addr %s253, 4
        %s255 = scalar_lea.vmem [#allocation7], %s254
        // Predicated region
        $region37: #{tpu_custom_call.1} parent=27 // pred_check
          %p256 = pneg %p123
        $region38: #{tpu_custom_call.1} parent=27 // pred_check_branch
          %258 = sbr.rel (%p256) target = $region40
        $region39: #{tpu_custom_call.1} parent=27 // pred_region
          %s259 = smul.u32 2, %s29
          %s261 = ssub.s32 64, 64
          %262 = vsyncadd %s252, %s261
          %s263 = smul.addr %s28, 2
          %s264 = sadd.s32 %s259, %s263
          %s265 = smul.addr %s27, 2
          %s266 = sadd.s32 %s264, %s265
          %s267 = smul.addr %s266, 32
          %s268 = scalar_lea.hbm %s2, %s267
          %s270 = sshll.u32 %s255, 4
          %s271 = int_to_ptr.vmem [resolvable:$true] %s270
          %273 = dma.vmem_to_hbm [thread:$0]  %s271, 64, %s268, %s252
        $region40: #{tpu_custom_call.1} parent=27 // pred_fallthru
          _
      $region28: #{tpu_custom_call.1} parent=5 // pred_fallthru
        _
      %p274 = scmp.le.s32.totalorder 2, %s17
      // Predicated region
      $region41: #{tpu_custom_call.1} parent=5 // pred_check
        %p275 = pneg %p274
      $region42: #{tpu_custom_call.1} parent=5 // pred_check_branch
        %277 = sbr.rel (%p275) target = $region44
      $region43: #{tpu_custom_call.1} parent=5 // pred_region
        %s278 = ssub.s32 %s17, 2
        // Predicated region
        $region45: #{tpu_custom_call.1} parent=43 // pred_check
          %p279 = pneg %p129
        $region46: #{tpu_custom_call.1} parent=43 // pred_check_branch
          %281 = sbr.rel (%p279) target = $region48
        $region47: #{tpu_custom_call.1} parent=43 // pred_region
          %s282 = sand.u32 %s114, 1
          %s283 = scalar_lea.sflag [#allocation4], %s282
          %s284 = sand.u32 %s114, 1
          %s285 = smul.addr %s284, 4
          %s286 = scalar_lea.vmem [#allocation7], %s285
          %287 = dma.done %s283, 64
        $region48: #{tpu_custom_call.1} parent=43 // pred_fallthru
          _
      $region44: #{tpu_custom_call.1} parent=5 // pred_fallthru
        _
    $region6: #{tpu_custom_call.1} parent=1 // loop_footer
      %s21 = sadd.s32 1, %s17
    $region7: #{tpu_custom_call.1} parent=1 // loop_footer_branch
      %16 = sbr.rel target = $region3
    $region8: #{tpu_custom_call.1} parent=1 // loop_exit
      _
    %288 = vsyncpa [#allocation3], 1
    %s289 = scalar_lea.sflag [#allocation3], 1
    %290 = vsyncpa %s289, 1
    %291 = vsyncpa [#allocation6], 1
    %s292 = scalar_lea.sflag [#allocation6], 1
    %293 = vsyncpa %s292, 1
    %294 = vsyncpa [#allocation4], 1
    %s295 = scalar_lea.sflag [#allocation4], 1
    %296 = vsyncpa %s295, 1

</llo_original>
